<compile_context>
chip_gen: v7x
topology: tpu7x:2x2x1
jax: 0.10.0
libtpu: 0.0.40
codegen_flags: <defaults>
</compile_context>

<pallas_src>
import jax
import jax.numpy as jnp
from jax.experimental import pallas as pl
from jax.experimental.pallas import tpu as pltpu


def _round_up(x, m):
    return ((x + m - 1) // m) * m


def _cdiv(a, b):
    return -(-a // b)


def _ffn_kernel(x_ref, w1_ref, w2_ref, bias_ref, o_ref, acc_ref):
    k = pl.program_id(1)

    @pl.when(k == 0)
    def _init():
        acc_ref[...] = jnp.zeros_like(acc_ref)

    # linear_1 partial over this I-tile: (tm, H) @ (H, tI), native-dtype MXU
    # matmul with f32 accumulation.
    h = jnp.dot(x_ref[...], w1_ref[...], preferred_element_type=jnp.float32)
    # linear_2 partial: (tm, tI) @ (tI, H), accumulated into f32 scratch.
    # Bias terms (b1 @ W2ᵀ + b2) are hoisted to the wrapper and added once
    # in the finalize branch.
    acc_ref[...] += jnp.dot(
        h.astype(w2_ref.dtype), w2_ref[...], preferred_element_type=jnp.float32
    )

    @pl.when(k == pl.num_programs(1) - 1)
    def _finalize():
        y = acc_ref[...] + bias_ref[...]
        # exact GELU (erf variant, matching torch.nn.GELU() default)
        g = 0.5 * y * (1.0 + jax.lax.erf(y * (1.0 / jnp.sqrt(2.0))))
        # dropout (eval mode) == identity
        o_ref[...] = g.astype(o_ref.dtype)


def _vmem_budget_bytes():
    """~75% of physical VMEM: ≈96 MiB on v5e/v6e, ≈48 MiB on v7x."""
    cap = 128 << 20
    try:
        info = pltpu.get_tpu_info()
        cap = int(getattr(info, "vmem_capacity_bytes", cap))
    except Exception:
        pass
    return min(cap * 3 // 4, 110 << 20)


def _select_tiles(M, H_pad, I, comp_itemsize, out_itemsize, budget, tm_req, ti_req):
    unit = 16 if comp_itemsize == 2 else 8

    def right_size(tm_max):
        # Pick tm so M_pad barely exceeds M (avoid padded-row matmul waste).
        tm_max = _round_up(max(unit, int(tm_max)), unit)
        n_tiles = max(1, _cdiv(M, tm_max))
        return max(unit, min(_round_up(_cdiv(M, n_tiles), unit), _round_up(M, unit)))

    def footprint(tm, ti, w_bufs):
        return (2 * tm * H_pad * comp_itemsize          # x tile (double-buffered)
                + 2 * tm * H_pad * out_itemsize         # out tile (double-buffered)
                + tm * H_pad * 4                        # f32 accumulator
                + w_bufs * 2 * H_pad * ti * comp_itemsize   # W1 + W2 tiles
                + H_pad * 4)                            # fused bias row

    if ti_req is not None:
        ti = min(int(ti_req), I)
        tm = right_size(tm_req if tm_req is not None else (256 if ti >= I else 512))
        return tm, ti

    # Preferred: full-resident weights, loaded from HBM exactly once and
    # single-buffered; modest row tile suffices (no weight re-streaming).
    tm = right_size(tm_req if tm_req is not None else 256)
    if footprint(tm, I, 1) <= budget:
        return tm, I

    # K-tiled fallback (small-VMEM / v7x-style): weights are re-streamed once
    # per row tile, so use a larger tm (HBM-roofline thresholds ≈240 v5e /
    # ≈320 v7x / ≈680 v6e for bf16 weights) and a deep ti (multiple of 256 to
    # fill the 256-deep MXU and amortize per-grid-step overhead).
    tm = right_size(tm_req if tm_req is not None else 512)
    for ti in (2048, 1024, 512, 256):
        if ti < I and footprint(tm, ti, 2) <= budget:
            return tm, ti
    ti = 256
    while tm > unit and footprint(tm, ti, 2) > budget:
        tm = _round_up(tm // 2, unit)
    return tm, ti


def feed_forward(x, w1_t, b1, w2_t, b2, *, compute_dtype=None, tm=None, ti=None,
                 vmem_limit_bytes=None):
    """FeedForward forward pass.

    x: (B, S, H). w1_t: (H, I) = linear_1.weight.T. b1: (I,).
    w2_t: (I, H) = linear_2.weight.T. b2: (H,).

    compute_dtype: dtype fed to the MXU (cast in the wrapper); accumulation,
      bias add and GELU stay f32. Defaults to x.dtype. Pass jnp.bfloat16 to
      halve weight HBM traffic and use the native bf16 MXU path (mixed
      precision: expect ~1e-3-level deviation vs a pure-f32 reference).
    tm / ti: optional row / intermediate-dim tile overrides (auto otherwise).
    """
    B, S, H = x.shape
    Hw, I = w1_t.shape
    assert Hw == H and w2_t.shape == (I, H) and b1.shape == (I,) and b2.shape == (H,)

    out_dtype = x.dtype
    comp_dtype = jnp.dtype(compute_dtype) if compute_dtype is not None else jnp.dtype(x.dtype)
    comp_itemsize = comp_dtype.itemsize
    out_itemsize = jnp.dtype(out_dtype).itemsize

    budget = int(vmem_limit_bytes) if vmem_limit_bytes is not None else _vmem_budget_bytes()

    # Lane-dense output: pad the hidden dim to a multiple of 128 so the
    # (tm, H) output tile uses unmasked stores.
    H_pad = _round_up(H, 128)
    M = B * S

    tm, ti = _select_tiles(M, H_pad, I, comp_itemsize, out_itemsize, budget, tm, ti)
    if ti >= I:
        I_pad = _round_up(I, 128)
        ti = I_pad
    else:
        ti = _round_up(ti, 128)
        I_pad = _round_up(I, ti)
    nk = I_pad // ti
    M_pad = _round_up(M, tm)

    # Fused bias: linear_2(linear_1(x)) = x @ W1ᵀ @ W2ᵀ + (b1 @ W2ᵀ + b2).
    # Precomputed in f32 in the wrapper; added once in the finalize branch.
    bias = (b2.astype(jnp.float32)
            + jnp.dot(b1.astype(jnp.float32), w2_t.astype(jnp.float32)))

    x2d = x.reshape(M, H).astype(comp_dtype)
    w1c = w1_t.astype(comp_dtype)
    w2c = w2_t.astype(comp_dtype)

    if M_pad != M or H_pad != H:
        x2d = jnp.pad(x2d, ((0, M_pad - M), (0, H_pad - H)))
    if H_pad != H or I_pad != I:
        w1c = jnp.pad(w1c, ((0, H_pad - H), (0, I_pad - I)))
        w2c = jnp.pad(w2c, ((0, I_pad - I), (0, H_pad - H)))
        bias = jnp.pad(bias, ((0, H_pad - H),))
    bias2d = bias.reshape(1, H_pad)

    single = pl.Buffered(1)

    def spec(shape, idx, mode=None):
        if mode is None:
            return pl.BlockSpec(shape, idx)
        return pl.BlockSpec(shape, idx, pipeline_mode=mode)

    # Single-buffer blocks whose index_map is constant across the whole grid.
    w_mode = single if nk == 1 else None
    grid = (M_pad // tm, nk)

    num_row_tiles = M_pad // tm
    w_stream = num_row_tiles if nk > 1 else 1   # weight re-streaming when K-tiled
    cost = pl.CostEstimate(
        flops=int(4 * M_pad * H_pad * I_pad),
        transcendentals=int(M_pad * H_pad),
        bytes_accessed=int(
            x2d.size * comp_itemsize
            + w_stream * (w1c.size + w2c.size) * comp_itemsize
            + bias2d.size * 4
            + M_pad * H_pad * out_itemsize
        ),
    )

    out2d = pl.pallas_call(
        _ffn_kernel,
        out_shape=jax.ShapeDtypeStruct((M_pad, H_pad), out_dtype),
        grid_spec=pltpu.PrefetchScalarGridSpec(
            num_scalar_prefetch=0,
            grid=grid,
            in_specs=[
                spec((tm, H_pad), lambda i, k: (i, 0)),           # x rows
                spec((H_pad, ti), lambda i, k: (0, k), w_mode),   # W1ᵀ tile
                spec((ti, H_pad), lambda i, k: (k, 0), w_mode),   # W2ᵀ tile
                spec((1, H_pad), lambda i, k: (0, 0), single),    # fused bias
            ],
            out_specs=pl.BlockSpec((tm, H_pad), lambda i, k: (i, 0)),
            scratch_shapes=[pltpu.VMEM((tm, H_pad), jnp.float32)],
        ),
        compiler_params=pltpu.CompilerParams(
            dimension_semantics=("parallel", "arbitrary"),
            vmem_limit_bytes=int(budget),
        ),
        cost_estimate=cost,
    )(x2d, w1c, w2c, bias2d)

    out2d = out2d[:M, :H]
    return out2d.reshape(B, S, H)


def _reference(x, w1_t, b1, w2_t, b2):
    h = jnp.einsum("bsh,hi->bsi", x, w1_t) + b1
    y = jnp.einsum("bsi,ih->bsh", h, w2_t) + b2
    return jax.nn.gelu(y, approximate=False)


if __name__ == "__main__":
    # Small BERT-shaped config (lane-dense: H and I multiples of 128).
    B, S, H, I = 2, 8, 128, 512

    key = jax.random.PRNGKey(0)
    kx, kw1, kb1, kw2, kb2 = jax.random.split(key, 5)

    x = jax.random.normal(kx, (B, S, H), dtype=jnp.float32)
    # nn.Linear weights are (out, in); pass them transposed for row-major matmul.
    w1_t = (jax.random.normal(kw1, (I, H), dtype=jnp.float32) * 0.02).T  # (H, I)
    b1 = jax.random.normal(kb1, (I,), dtype=jnp.float32) * 0.02
    w2_t = (jax.random.normal(kw2, (H, I), dtype=jnp.float32) * 0.02).T  # (I, H)
    b2 = jax.random.normal(kb2, (H,), dtype=jnp.float32) * 0.02

    ref = _reference(x, w1_t, b1, w2_t, b2)

    # Path 1: auto tiling — weights fully resident, single-buffered (v5e/v6e default).
    out_full = jax.block_until_ready(feed_forward(x, w1_t, b1, w2_t, b2))
    assert out_full.shape == (B, S, H)
    assert jnp.allclose(out_full, ref, atol=1e-4, rtol=1e-4), "full-I mismatch"

    # Path 2: explicit K-tiling (ti multiple of 256) with the f32 accumulator.
    out_kt = jax.block_until_ready(feed_forward(x, w1_t, b1, w2_t, b2, ti=256))
    assert jnp.allclose(out_kt, ref, atol=1e-4, rtol=1e-4), "K-tiled mismatch"

    # Path 3: bf16 MXU operands (wrapper cast), f32 accumulation/bias/GELU.
    out_bf16 = jax.block_until_ready(
        feed_forward(x, w1_t, b1, w2_t, b2, compute_dtype=jnp.bfloat16))
    assert jnp.allclose(out_bf16, ref, atol=5e-2, rtol=5e-2), "bf16 mismatch"

    print("KERNEL_OK")
</pallas_src>

<mosaic_0001>
module attributes {stable_mosaic.version = 11 : i64} {
  func.func @_ffn_kernel(%arg0: i32, %arg1: i32, %arg2: memref<16x128xf32, #tpu.memory_space<vmem>>, %arg3: memref<128x512xf32, #tpu.memory_space<vmem>>, %arg4: memref<512x128xf32, #tpu.memory_space<vmem>>, %arg5: memref<1x128xf32, #tpu.memory_space<vmem>>, %arg6: memref<16x128xf32, #tpu.memory_space<vmem>>, %arg7: memref<16x128xf32, #tpu.memory_space<vmem>>) attributes {dimension_semantics = [#tpu.dimension_semantics<parallel>, #tpu.dimension_semantics<arbitrary>], iteration_bounds = array<i64: 1, 1>, scalar_prefetch = 0 : i64, scratch_operands = 1 : i64, tpu.core_type = #tpu.core_type<tc>, window_params = [{transform_indices = @transform_0, window_bounds = array<i64: 16, 128>}, {pipeline_mode = #tpu.pipeline_mode<synchronous>, transform_indices = @transform_1, window_bounds = array<i64: 128, 512>}, {pipeline_mode = #tpu.pipeline_mode<synchronous>, transform_indices = @transform_2, window_bounds = array<i64: 512, 128>}, {pipeline_mode = #tpu.pipeline_mode<synchronous>, transform_indices = @transform_3, window_bounds = array<i64: 1, 128>}, {transform_indices = @transform_4, window_bounds = array<i64: 16, 128>}]} {
    %c0_i32 = arith.constant 0 : i32
    %0 = arith.cmpi eq, %arg1, %c0_i32 : i32
    %1 = arith.extui %0 : i1 to i32
    %c0_i32_0 = arith.constant 0 : i32
    %2 = arith.cmpi ne, %1, %c0_i32_0 : i32
    scf.if %2 {
      %cst_13 = arith.constant 0.000000e+00 : f32
      %14 = vector.broadcast %cst_13 : f32 to vector<16x128xf32>
      %c0_14 = arith.constant 0 : index
      %c0_15 = arith.constant 0 : index
      %15 = vector.load %arg7[%c0_14, %c0_15] : memref<16x128xf32, #tpu.memory_space<vmem>>, vector<16x128xf32>
      tpu.vector_store %arg7[%c0_14, %c0_15], %14 {strides = array<i32>} : memref<16x128xf32, #tpu.memory_space<vmem>>, vector<16x128xf32>,
    } else {
    }
    %c0 = arith.constant 0 : index
    %c0_1 = arith.constant 0 : index
    %3 = vector.load %arg2[%c0, %c0_1] : memref<16x128xf32, #tpu.memory_space<vmem>>, vector<16x128xf32>
    %c0_2 = arith.constant 0 : index
    %c0_3 = arith.constant 0 : index
    %4 = vector.load %arg3[%c0_2, %c0_3] : memref<128x512xf32, #tpu.memory_space<vmem>>, vector<128x512xf32>
    %cst = arith.constant dense<0.000000e+00> : vector<16x512xf32>
    %5 = tpu.matmul %3, %4, %cst {dimension_numbers = #tpu.dot_dimension_numbers<[1], [0], [0], [1], [0, 0, 1, 1], [], []>} : vector<16x128xf32>, vector<128x512xf32>, vector<16x512xf32> -> vector<16x512xf32>
    %c0_4 = arith.constant 0 : index
    %c0_5 = arith.constant 0 : index
    %6 = vector.load %arg7[%c0_4, %c0_5] : memref<16x128xf32, #tpu.memory_space<vmem>>, vector<16x128xf32>
    %c0_6 = arith.constant 0 : index
    %c0_7 = arith.constant 0 : index
    %7 = vector.load %arg4[%c0_6, %c0_7] : memref<512x128xf32, #tpu.memory_space<vmem>>, vector<512x128xf32>
    %cst_8 = arith.constant dense<0.000000e+00> : vector<16x128xf32>
    %8 = tpu.matmul %5, %7, %cst_8 {dimension_numbers = #tpu.dot_dimension_numbers<[1], [0], [0], [1], [0, 0, 1, 1], [], []>} : vector<16x512xf32>, vector<512x128xf32>, vector<16x128xf32> -> vector<16x128xf32>
    %9 = arith.addf %6, %8 : vector<16x128xf32>
    %c0_9 = arith.constant 0 : index
    %c0_10 = arith.constant 0 : index
    %10 = vector.load %arg7[%c0_9, %c0_10] : memref<16x128xf32, #tpu.memory_space<vmem>>, vector<16x128xf32>
    tpu.vector_store %arg7[%c0_9, %c0_10], %9 {strides = array<i32>} : memref<16x128xf32, #tpu.memory_space<vmem>>, vector<16x128xf32>,
    %c0_i32_11 = arith.constant 0 : i32
    %11 = arith.cmpi eq, %arg1, %c0_i32_11 : i32
    %12 = arith.extui %11 : i1 to i32
    %c0_i32_12 = arith.constant 0 : i32
    %13 = arith.cmpi ne, %12, %c0_i32_12 : i32
    scf.if %13 {
      %c0_13 = arith.constant 0 : index
      %c0_14 = arith.constant 0 : index
      %14 = vector.load %arg7[%c0_13, %c0_14] : memref<16x128xf32, #tpu.memory_space<vmem>>, vector<16x128xf32>
      %c0_15 = arith.constant 0 : index
      %c0_16 = arith.constant 0 : index
      %15 = vector.load %arg5[%c0_15, %c0_16] : memref<1x128xf32, #tpu.memory_space<vmem>>, vector<1x128xf32>
      %16 = vector.broadcast %15 : vector<1x128xf32> to vector<16x128xf32>
      %17 = arith.addf %14, %16 : vector<16x128xf32>
      %cst_17 = arith.constant 5.000000e-01 : f32
      %18 = vector.broadcast %cst_17 : f32 to vector<16x128xf32>
      %19 = arith.mulf %18, %17 : vector<16x128xf32>
      %cst_18 = arith.constant 2.000000e+00 : f32
      %20 = math.sqrt %cst_18 : f32
      %cst_19 = arith.constant 1.000000e+00 : f32
      %21 = arith.divf %cst_19, %20 : f32
      %22 = vector.broadcast %21 : f32 to vector<16x128xf32>
      %23 = arith.mulf %17, %22 : vector<16x128xf32>
      %24 = math.erf %23 : vector<16x128xf32>
      %cst_20 = arith.constant 1.000000e+00 : f32
      %25 = vector.broadcast %cst_20 : f32 to vector<16x128xf32>
      %26 = arith.addf %25, %24 : vector<16x128xf32>
      %27 = arith.mulf %19, %26 : vector<16x128xf32>
      %c0_21 = arith.constant 0 : index
      %c0_22 = arith.constant 0 : index
      %28 = vector.load %arg6[%c0_21, %c0_22] : memref<16x128xf32, #tpu.memory_space<vmem>>, vector<16x128xf32>
      tpu.vector_store %arg6[%c0_21, %c0_22], %27 {strides = array<i32>} : memref<16x128xf32, #tpu.memory_space<vmem>>, vector<16x128xf32>,
    } else {
    }
    return
  }
  func.func @transform_0(%arg0: i32, %arg1: i32) -> (i32, i32) {
    %c0_i32 = arith.constant 0 : i32
    %c0_i32_0 = arith.constant 0 : i32
    return %arg0, %c0_i32 : i32, i32
  }
  func.func @transform_1(%arg0: i32, %arg1: i32) -> (i32, i32) {
    %c0_i32 = arith.constant 0 : i32
    %c0_i32_0 = arith.constant 0 : i32
    return %c0_i32, %arg1 : i32, i32
  }
  func.func @transform_2(%arg0: i32, %arg1: i32) -> (i32, i32) {
    %c0_i32 = arith.constant 0 : i32
    %c0_i32_0 = arith.constant 0 : i32
    return %arg1, %c0_i32 : i32, i32
  }
  func.func @transform_3(%arg0: i32, %arg1: i32) -> (i32, i32) {
    %c0_i32 = arith.constant 0 : i32
    %c0_i32_0 = arith.constant 0 : i32
    %c0_i32_1 = arith.constant 0 : i32
    return %c0_i32, %c0_i32_0 : i32, i32
  }
  func.func @transform_4(%arg0: i32, %arg1: i32) -> (i32, i32) {
    %c0_i32 = arith.constant 0 : i32
    %c0_i32_0 = arith.constant 0 : i32
    return %arg0, %c0_i32 : i32, i32
  }
}

</mosaic_0001>

<llo_original>
// kernel: tpu_custom_call.1
$region0: #{tpu_custom_call.1}
  #allocation0 [shape = 'u32[]', space=smem, size = 0x4, offset = 0x4, fixed_abs, tag = 'smem constant byte address 0x4 - core index']
  #allocation1 [shape = 'u32[144,128]{1,0:T(1,128)}', space=vmem, size = 0x12000, scoped, tag = 'internal scratch']
  #allocation2 [shape = 'f32[16,128]{1,0:T(8,128)}', space=vmem, size = 0x2000, scoped, tag = 'scratch operand']
  %s0 = inlined_call_operand.hbm [shape: f32[16,128], index: 0, kind: input, shape index: {}]
  %s1 = inlined_call_operand.hbm [shape: f32[128,512], index: 1, kind: input, shape index: {}]
  %s2 = inlined_call_operand.hbm [shape: f32[512,128], index: 2, kind: input, shape index: {}]
  %s3 = inlined_call_operand.hbm [shape: f32[1,128], index: 3, kind: input, shape index: {}]
  %s4 = inlined_call_operand.hbm [shape: f32[16,128], index: 4, kind: output, shape index: {}]
  %s5 = sld [smem:[#allocation0]]
  $region50: #{tpu_custom_call.1} parent=0
    _
  %s7 = ssub.s32 1, %s5
  %s8 = scalar_select 0, %s7, %s5
  $region1: #{tpu_custom_call.1} parent=0
    #allocation3 [shape = 'u8[8192]{0}', space=vmem, size = 0x2000, scoped, tag = 'input window, operand 0, single buffered']
    #allocation4 [shape = 's32[1]{0}', space=sflag, size = 0x4, scoped, tag = 'scoped memory for tpu_custom_call.1']
    #allocation5 [shape = 's32[1]{0}', space=sflag, size = 0x4, scoped, tag = 'scoped memory for tpu_custom_call.1']
    #allocation6 [shape = 'u8[262144]{0}', space=vmem, size = 0x40000, scoped, tag = 'input window, operand 1, single buffered']
    #allocation7 [shape = 's32[1]{0}', space=sflag, size = 0x4, scoped, tag = 'scoped memory for tpu_custom_call.1']
    #allocation8 [shape = 'u8[262144]{0}', space=vmem, size = 0x40000, scoped, tag = 'input window, operand 2, single buffered']
    #allocation9 [shape = 'u8[512]{0}', space=vmem, size = 0x400, scoped, tag = 'input window, operand 3, single buffered']
    #allocation10 [shape = 's32[1]{0}', space=sflag, size = 0x4, scoped, tag = 'scoped memory for tpu_custom_call.1']
    #allocation11 [shape = 'u8[8192]{0}', space=vmem, size = 0x2000, scoped, tag = 'output window, operand 0, single buffered']
    %9 = vsyncpa [#allocation4], 0
    %10 = vsyncpa [#allocation7], 0
    %11 = vsyncpa [#allocation10], 0
    %12 = vsyncpa [#allocation5], 0
    // Predicated region
    $region2: #{tpu_custom_call.1} parent=1 // pred_check
      _
    $region3: #{tpu_custom_call.1} parent=1 // pred_check_branch
      %14 = sbr.rel (0) target = $region5
    $region4: #{tpu_custom_call.1} parent=1 // pred_region
      %s16 = ssub.s32 256, 256
      %17 = vsyncadd [#allocation4], %s16
      %s18 = sshll.u32 [#allocation3], 4
      %s19 = int_to_ptr.vmem [resolvable:$true] %s18
      %24 = dma.hbm_to_vmem [thread:$0]  %s0, 256, %s19, [#allocation4], 128, 128, 8
    $region5: #{tpu_custom_call.1} parent=1 // pred_fallthru
      _
    // Predicated region
    $region6: #{tpu_custom_call.1} parent=1 // pred_check
      _
    $region7: #{tpu_custom_call.1} parent=1 // pred_check_branch
      %26 = sbr.rel (0) target = $region9
    $region8: #{tpu_custom_call.1} parent=1 // pred_region
      %s28 = ssub.s32 8192, 8192
      %29 = vsyncadd [#allocation7], %s28
      %s30 = sshll.u32 [#allocation6], 4
      %s31 = int_to_ptr.vmem [resolvable:$true] %s30
      %36 = dma.hbm_to_vmem [thread:$0]  %s1, 8192, %s31, [#allocation7], 512, 512, 32
    $region9: #{tpu_custom_call.1} parent=1 // pred_fallthru
      _
    // Predicated region
    $region10: #{tpu_custom_call.1} parent=1 // pred_check
      _
    $region11: #{tpu_custom_call.1} parent=1 // pred_check_branch
      %38 = sbr.rel (0) target = $region13
    $region12: #{tpu_custom_call.1} parent=1 // pred_region
      %s40 = ssub.s32 8192, 8192
      %41 = vsyncadd [#allocation7], %s40
      %s42 = sshll.u32 [#allocation8], 4
      %s43 = int_to_ptr.vmem [resolvable:$true] %s42
      %48 = dma.hbm_to_vmem [thread:$0]  %s2, 8192, %s43, [#allocation7], 128, 128, 8
    $region13: #{tpu_custom_call.1} parent=1 // pred_fallthru
      _
    // Predicated region
    $region14: #{tpu_custom_call.1} parent=1 // pred_check
      _
    $region15: #{tpu_custom_call.1} parent=1 // pred_check_branch
      %50 = sbr.rel (0) target = $region17
    $region16: #{tpu_custom_call.1} parent=1 // pred_region
      %s52 = ssub.s32 16, 16
      %53 = vsyncadd [#allocation10], %s52
      %s55 = sshll.u32 [#allocation9], 4
      %s56 = int_to_ptr.vmem [resolvable:$true] %s55
      %58 = dma.hbm_to_vmem [thread:$0]  %s3, 16, %s56, [#allocation10]
    $region17: #{tpu_custom_call.1} parent=1 // pred_fallthru
      _
    // Predicated region
    $region18: #{tpu_custom_call.1} parent=1 // pred_check
      _
    $region19: #{tpu_custom_call.1} parent=1 // pred_check_branch
      %60 = sbr.rel (0) target = $region21
    $region20: #{tpu_custom_call.1} parent=1 // pred_region
      %61 = dma.done [#allocation4], 256
    $region21: #{tpu_custom_call.1} parent=1 // pred_fallthru
      _
    // Predicated region
    $region22: #{tpu_custom_call.1} parent=1 // pred_check
      _
    $region23: #{tpu_custom_call.1} parent=1 // pred_check_branch
      %63 = sbr.rel (0) target = $region25
    $region24: #{tpu_custom_call.1} parent=1 // pred_region
      %64 = dma.done [#allocation7], 8192
    $region25: #{tpu_custom_call.1} parent=1 // pred_fallthru
      _
    // Predicated region
    $region26: #{tpu_custom_call.1} parent=1 // pred_check
      _
    $region27: #{tpu_custom_call.1} parent=1 // pred_check_branch
      %66 = sbr.rel (0) target = $region29
    $region28: #{tpu_custom_call.1} parent=1 // pred_region
      %67 = dma.done [#allocation7], 8192
    $region29: #{tpu_custom_call.1} parent=1 // pred_fallthru
      _
    // Predicated region
    $region30: #{tpu_custom_call.1} parent=1 // pred_check
      _
    $region31: #{tpu_custom_call.1} parent=1 // pred_check_branch
      %69 = sbr.rel (0) target = $region33
    $region32: #{tpu_custom_call.1} parent=1 // pred_region
      %70 = dma.done [#allocation10], 16
    $region33: #{tpu_custom_call.1} parent=1 // pred_fallthru
      _
    %p71 = scmp.eq.s32.totalorder 0, 0
    // Predicated region
    $region34: #{tpu_custom_call.1} parent=1 // pred_check
      %p72 = pneg %p71
    $region35: #{tpu_custom_call.1} parent=1 // pred_check_branch
      %74 = sbr.rel (%p72) target = $region37
    $region36: #{tpu_custom_call.1} parent=1 // pred_region
      %75 = vst [vmem:[#allocation2] sm:$0xff] 0.0
      %76 = vst [vmem:[#allocation2 + $0x8] sm:$0xff] 0.0
    $region37: #{tpu_custom_call.1} parent=1 // pred_fallthru
      _
    %v77 = vld [vmem:[#allocation3] sm:$0xff]
    %v78 = vld [vmem:[#allocation3 + $0x8] sm:$0xff]
    %v79 = vld [vmem:[#allocation6] sm:$0xff]
    %v80 = vld [vmem:[#allocation6 + $0x8] sm:$0xff]
    %v81 = vld [vmem:[#allocation6 + $0x10] sm:$0xff]
    %v82 = vld [vmem:[#allocation6 + $0x18] sm:$0xff]
    %v83 = vld [vmem:[#allocation6 + $0x20] sm:$0xff]
    %v84 = vld [vmem:[#allocation6 + $0x28] sm:$0xff]
    %v85 = vld [vmem:[#allocation6 + $0x30] sm:$0xff]
    %v86 = vld [vmem:[#allocation6 + $0x38] sm:$0xff]
    %v87 = vld [vmem:[#allocation6 + $0x40] sm:$0xff]
    %v88 = vld [vmem:[#allocation6 + $0x48] sm:$0xff]
    %v89 = vld [vmem:[#allocation6 + $0x50] sm:$0xff]
    %v90 = vld [vmem:[#allocation6 + $0x58] sm:$0xff]
    %v91 = vld [vmem:[#allocation6 + $0x60] sm:$0xff]
    %v92 = vld [vmem:[#allocation6 + $0x68] sm:$0xff]
    %v93 = vld [vmem:[#allocation6 + $0x70] sm:$0xff]
    %v94 = vld [vmem:[#allocation6 + $0x78] sm:$0xff]
    %v95 = vld [vmem:[#allocation6 + $0x80] sm:$0xff]
    %v96 = vld [vmem:[#allocation6 + $0x88] sm:$0xff]
    %v97 = vld [vmem:[#allocation6 + $0x90] sm:$0xff]
    %v98 = vld [vmem:[#allocation6 + $0x98] sm:$0xff]
    %v99 = vld [vmem:[#allocation6 + $0xa0] sm:$0xff]
    %v100 = vld [vmem:[#allocation6 + $0xa8] sm:$0xff]
    %v101 = vld [vmem:[#allocation6 + $0xb0] sm:$0xff]
    %v102 = vld [vmem:[#allocation6 + $0xb8] sm:$0xff]
    %v103 = vld [vmem:[#allocation6 + $0xc0] sm:$0xff]
    %v104 = vld [vmem:[#allocation6 + $0xc8] sm:$0xff]
    %v105 = vld [vmem:[#allocation6 + $0xd0] sm:$0xff]
    %v106 = vld [vmem:[#allocation6 + $0xd8] sm:$0xff]
    %v107 = vld [vmem:[#allocation6 + $0xe0] sm:$0xff]
    %v108 = vld [vmem:[#allocation6 + $0xe8] sm:$0xff]
    %v109 = vld [vmem:[#allocation6 + $0xf0] sm:$0xff]
    %v110 = vld [vmem:[#allocation6 + $0xf8] sm:$0xff]
    %v111 = vld [vmem:[#allocation6 + $0x100] sm:$0xff]
    %v112 = vld [vmem:[#allocation6 + $0x108] sm:$0xff]
    %v113 = vld [vmem:[#allocation6 + $0x110] sm:$0xff]
    %v114 = vld [vmem:[#allocation6 + $0x118] sm:$0xff]
    %v115 = vld [vmem:[#allocation6 + $0x120] sm:$0xff]
    %v116 = vld [vmem:[#allocation6 + $0x128] sm:$0xff]
    %v117 = vld [vmem:[#allocation6 + $0x130] sm:$0xff]
    %v118 = vld [vmem:[#allocation6 + $0x138] sm:$0xff]
    %v119 = vld [vmem:[#allocation6 + $0x140] sm:$0xff]
    %v120 = vld [vmem:[#allocation6 + $0x148] sm:$0xff]
    %v121 = vld [vmem:[#allocation6 + $0x150] sm:$0xff]
    %v122 = vld [vmem:[#allocation6 + $0x158] sm:$0xff]
    %v123 = vld [vmem:[#allocation6 + $0x160] sm:$0xff]
    %v124 = vld [vmem:[#allocation6 + $0x168] sm:$0xff]
    %v125 = vld [vmem:[#allocation6 + $0x170] sm:$0xff]
    %v126 = vld [vmem:[#allocation6 + $0x178] sm:$0xff]
    %v127 = vld [vmem:[#allocation6 + $0x180] sm:$0xff]
    %v128 = vld [vmem:[#allocation6 + $0x188] sm:$0xff]
    %v129 = vld [vmem:[#allocation6 + $0x190] sm:$0xff]
    %v130 = vld [vmem:[#allocation6 + $0x198] sm:$0xff]
    %v131 = vld [vmem:[#allocation6 + $0x1a0] sm:$0xff]
    %v132 = vld [vmem:[#allocation6 + $0x1a8] sm:$0xff]
    %v133 = vld [vmem:[#allocation6 + $0x1b0] sm:$0xff]
    %v134 = vld [vmem:[#allocation6 + $0x1b8] sm:$0xff]
    %v135 = vld [vmem:[#allocation6 + $0x1c0] sm:$0xff]
    %v136 = vld [vmem:[#allocation6 + $0x1c8] sm:$0xff]
    %v137 = vld [vmem:[#allocation6 + $0x1d0] sm:$0xff]
    %v138 = vld [vmem:[#allocation6 + $0x1d8] sm:$0xff]
    %v139 = vld [vmem:[#allocation6 + $0x1e0] sm:$0xff]
    %v140 = vld [vmem:[#allocation6 + $0x1e8] sm:$0xff]
    %v141 = vld [vmem:[#allocation6 + $0x1f0] sm:$0xff]
    %v142 = vld [vmem:[#allocation6 + $0x1f8] sm:$0xff]
    %143 = vmatprep.subr.mxu0 %v80
    %144 = vmatpush1.msra.mxu0 %v79
    %145 = vmatprep.subr.mxu0 %v84
    %146 = vmatpush1.msra.mxu0 %v83
    %147 = vmatprep.subr.mxu0 %v88
    %148 = vmatpush1.msra.mxu0 %v87
    %149 = vmatprep.subr.mxu0 %v92
    %150 = vmatpush1.msra.mxu0 %v91
    %151 = vmatprep.subr.mxu0 %v96
    %152 = vmatpush1.msra.mxu0 %v95
    %153 = vmatprep.subr.mxu0 %v100
    %154 = vmatpush1.msra.mxu0 %v99
    %155 = vmatprep.subr.mxu0 %v104
    %156 = vmatpush1.msra.mxu0 %v103
    %157 = vmatprep.subr.mxu0 %v108
    %158 = vmatpush1.msra.mxu0 %v107
    %159 = vmatprep.subr.mxu0 %v112
    %160 = vmatpush1.msra.mxu0 %v111
    %161 = vmatprep.subr.mxu0 %v116
    %162 = vmatpush1.msra.mxu0 %v115
    %163 = vmatprep.subr.mxu0 %v120
    %164 = vmatpush1.msra.mxu0 %v119
    %165 = vmatprep.subr.mxu0 %v124
    %166 = vmatpush1.msra.mxu0 %v123
    %167 = vmatprep.subr.mxu0 %v128
    %168 = vmatpush1.msra.mxu0 %v127
    %169 = vmatprep.subr.mxu0 %v132
    %170 = vmatpush1.msra.mxu0 %v131
    %171 = vmatprep.subr.mxu0 %v136
    %172 = vmatpush1.msra.mxu0 %v135
    %173 = vmatprep.subr.mxu0 %v140
    %174 = vmatpush1.msra.mxu0 %v139
    %175 = vmatprep.subr.mxu0 0.0
    %176 = vmatpush1.msra.mxu0 0.0
    %177 = vmatprep.subr.mxu0 0.0
    %178 = vmatpush1.msra.mxu0 0.0
    %179 = vmatprep.subr.mxu0 0.0
    %180 = vmatpush1.msra.mxu0 0.0
    %181 = vmatprep.subr.mxu0 0.0
    %182 = vmatpush1.msra.mxu0 0.0
    %183 = vmatprep.subr.mxu0 0.0
    %184 = vmatpush1.msra.mxu0 0.0
    %185 = vmatprep.subr.mxu0 0.0
    %186 = vmatpush1.msra.mxu0 0.0
    %187 = vmatprep.subr.mxu0 0.0
    %188 = vmatpush1.msra.mxu0 0.0
    %189 = vmatprep.subr.mxu0 0.0
    %190 = vmatpush1.msra.mxu0 0.0
    %191 = vmatprep.subr.mxu0 0.0
    %192 = vmatpush1.msra.mxu0 0.0
    %193 = vmatprep.subr.mxu0 0.0
    %194 = vmatpush1.msra.mxu0 0.0
    %195 = vmatprep.subr.mxu0 0.0
    %196 = vmatpush1.msra.mxu0 0.0
    %197 = vmatprep.subr.mxu0 0.0
    %198 = vmatpush1.msra.mxu0 0.0
    %199 = vmatprep.subr.mxu0 0.0
    %200 = vmatpush1.msra.mxu0 0.0
    %201 = vmatprep.subr.mxu0 0.0
    %202 = vmatpush1.msra.mxu0 0.0
    %203 = vmatprep.subr.mxu0 0.0
    %204 = vmatpush1.msra.mxu0 0.0
    %205 = vmatprep.subr.mxu0 0.0
    %206 = vmatpush1.msra.mxu0 0.0
    %207 = vmatprep.mubr.f32.mxu0 0.0
    %208 = vmatmul.mubr.f32.gmra.mrb[0].mxu0 %v77
    %v209 = vpop.f32.mrb[0].mxu0
    %v210 = vadd.f32 0.0, %v209
    %v211 = vpop.f32.mrb[0].mxu0
    %v212 = vadd.f32 0.0, %v211
    %213 = vmatprep.mubr.f32.mxu0 0.0
    %214 = vmatmul.mubr.f32.gmra.mrb[0].mxu0 %v78
    %v215 = vpop.f32.mrb[0].mxu0
    %v216 = vadd.f32 0.0, %v215
    %v217 = vpop.f32.mrb[0].mxu0
    %v218 = vadd.f32 0.0, %v217
    %219 = vdwg.mxu0
    %220 = vmatprep.subr.mxu0 %v82
    %221 = vmatpush1.msra.mxu0 %v81
    %222 = vmatprep.subr.mxu0 %v86
    %223 = vmatpush1.msra.mxu0 %v85
    %224 = vmatprep.subr.mxu0 %v90
    %225 = vmatpush1.msra.mxu0 %v89
    %226 = vmatprep.subr.mxu0 %v94
    %227 = vmatpush1.msra.mxu0 %v93
    %228 = vmatprep.subr.mxu0 %v98
    %229 = vmatpush1.msra.mxu0 %v97
    %230 = vmatprep.subr.mxu0 %v102
    %231 = vmatpush1.msra.mxu0 %v101
    %232 = vmatprep.subr.mxu0 %v106
    %233 = vmatpush1.msra.mxu0 %v105
    %234 = vmatprep.subr.mxu0 %v110
    %235 = vmatpush1.msra.mxu0 %v109
    %236 = vmatprep.subr.mxu0 %v114
    %237 = vmatpush1.msra.mxu0 %v113
    %238 = vmatprep.subr.mxu0 %v118
    %239 = vmatpush1.msra.mxu0 %v117
    %240 = vmatprep.subr.mxu0 %v122
    %241 = vmatpush1.msra.mxu0 %v121
    %242 = vmatprep.subr.mxu0 %v126
    %243 = vmatpush1.msra.mxu0 %v125
    %244 = vmatprep.subr.mxu0 %v130
    %245 = vmatpush1.msra.mxu0 %v129
    %246 = vmatprep.subr.mxu0 %v134
    %247 = vmatpush1.msra.mxu0 %v133
    %248 = vmatprep.subr.mxu0 %v138
    %249 = vmatpush1.msra.mxu0 %v137
    %250 = vmatprep.subr.mxu0 %v142
    %251 = vmatpush1.msra.mxu0 %v141
    %252 = vmatprep.subr.mxu0 0.0
    %253 = vmatpush1.msra.mxu0 0.0
    %254 = vmatprep.subr.mxu0 0.0
    %255 = vmatpush1.msra.mxu0 0.0
    %256 = vmatprep.subr.mxu0 0.0
    %257 = vmatpush1.msra.mxu0 0.0
    %258 = vmatprep.subr.mxu0 0.0
    %259 = vmatpush1.msra.mxu0 0.0
    %260 = vmatprep.subr.mxu0 0.0
    %261 = vmatpush1.msra.mxu0 0.0
    %262 = vmatprep.subr.mxu0 0.0
    %263 = vmatpush1.msra.mxu0 0.0
    %264 = vmatprep.subr.mxu0 0.0
    %265 = vmatpush1.msra.mxu0 0.0
    %266 = vmatprep.subr.mxu0 0.0
    %267 = vmatpush1.msra.mxu0 0.0
    %268 = vmatprep.subr.mxu0 0.0
    %269 = vmatpush1.msra.mxu0 0.0
    %270 = vmatprep.subr.mxu0 0.0
    %271 = vmatpush1.msra.mxu0 0.0
    %272 = vmatprep.subr.mxu0 0.0
    %273 = vmatpush1.msra.mxu0 0.0
    %274 = vmatprep.subr.mxu0 0.0
    %275 = vmatpush1.msra.mxu0 0.0
    %276 = vmatprep.subr.mxu0 0.0
    %277 = vmatpush1.msra.mxu0 0.0
    %278 = vmatprep.subr.mxu0 0.0
    %279 = vmatpush1.msra.mxu0 0.0
    %280 = vmatprep.subr.mxu0 0.0
    %281 = vmatpush1.msra.mxu0 0.0
    %282 = vmatprep.subr.mxu0 0.0
    %283 = vmatpush1.msra.mxu0 0.0
    %284 = vmatprep.mubr.f32.mxu0 0.0
    %285 = vmatmul.mubr.f32.gmra.mrb[0].mxu0 %v77
    %v286 = vpop.f32.mrb[0].mxu0
    %v287 = vadd.f32 0.0, %v286
    %v288 = vpop.f32.mrb[0].mxu0
    %v289 = vadd.f32 0.0, %v288
    %290 = vmatprep.mubr.f32.mxu0 0.0
    %291 = vmatmul.mubr.f32.gmra.mrb[0].mxu0 %v78
    %v292 = vpop.f32.mrb[0].mxu0
    %v293 = vadd.f32 0.0, %v292
    %v294 = vpop.f32.mrb[0].mxu0
    %v295 = vadd.f32 0.0, %v294
    %296 = vdwg.mxu0
    %v297 = vld [vmem:[#allocation2] sm:$0xff]
    %v298 = vld [vmem:[#allocation2 + $0x8] sm:$0xff]
    %v299 = vld [vmem:[#allocation8] sm:$0xff]
    %v300 = vld [vmem:[#allocation8 + $0x8] sm:$0xff]
    %v301 = vld [vmem:[#allocation8 + $0x10] sm:$0xff]
    %v302 = vld [vmem:[#allocation8 + $0x18] sm:$0xff]
    %v303 = vld [vmem:[#allocation8 + $0x20] sm:$0xff]
    %v304 = vld [vmem:[#allocation8 + $0x28] sm:$0xff]
    %v305 = vld [vmem:[#allocation8 + $0x30] sm:$0xff]
    %v306 = vld [vmem:[#allocation8 + $0x38] sm:$0xff]
    %v307 = vld [vmem:[#allocation8 + $0x40] sm:$0xff]
    %v308 = vld [vmem:[#allocation8 + $0x48] sm:$0xff]
    %v309 = vld [vmem:[#allocation8 + $0x50] sm:$0xff]
    %v310 = vld [vmem:[#allocation8 + $0x58] sm:$0xff]
    %v311 = vld [vmem:[#allocation8 + $0x60] sm:$0xff]
    %v312 = vld [vmem:[#allocation8 + $0x68] sm:$0xff]
    %v313 = vld [vmem:[#allocation8 + $0x70] sm:$0xff]
    %v314 = vld [vmem:[#allocation8 + $0x78] sm:$0xff]
    %v315 = vld [vmem:[#allocation8 + $0x80] sm:$0xff]
    %v316 = vld [vmem:[#allocation8 + $0x88] sm:$0xff]
    %v317 = vld [vmem:[#allocation8 + $0x90] sm:$0xff]
    %v318 = vld [vmem:[#allocation8 + $0x98] sm:$0xff]
    %v319 = vld [vmem:[#allocation8 + $0xa0] sm:$0xff]
    %v320 = vld [vmem:[#allocation8 + $0xa8] sm:$0xff]
    %v321 = vld [vmem:[#allocation8 + $0xb0] sm:$0xff]
    %v322 = vld [vmem:[#allocation8 + $0xb8] sm:$0xff]
    %v323 = vld [vmem:[#allocation8 + $0xc0] sm:$0xff]
    %v324 = vld [vmem:[#allocation8 + $0xc8] sm:$0xff]
    %v325 = vld [vmem:[#allocation8 + $0xd0] sm:$0xff]
    %v326 = vld [vmem:[#allocation8 + $0xd8] sm:$0xff]
    %v327 = vld [vmem:[#allocation8 + $0xe0] sm:$0xff]
    %v328 = vld [vmem:[#allocation8 + $0xe8] sm:$0xff]
    %v329 = vld [vmem:[#allocation8 + $0xf0] sm:$0xff]
    %v330 = vld [vmem:[#allocation8 + $0xf8] sm:$0xff]
    %v331 = vld [vmem:[#allocation8 + $0x100] sm:$0xff]
    %v332 = vld [vmem:[#allocation8 + $0x108] sm:$0xff]
    %v333 = vld [vmem:[#allocation8 + $0x110] sm:$0xff]
    %v334 = vld [vmem:[#allocation8 + $0x118] sm:$0xff]
    %v335 = vld [vmem:[#allocation8 + $0x120] sm:$0xff]
    %v336 = vld [vmem:[#allocation8 + $0x128] sm:$0xff]
    %v337 = vld [vmem:[#allocation8 + $0x130] sm:$0xff]
    %v338 = vld [vmem:[#allocation8 + $0x138] sm:$0xff]
    %v339 = vld [vmem:[#allocation8 + $0x140] sm:$0xff]
    %v340 = vld [vmem:[#allocation8 + $0x148] sm:$0xff]
    %v341 = vld [vmem:[#allocation8 + $0x150] sm:$0xff]
    %v342 = vld [vmem:[#allocation8 + $0x158] sm:$0xff]
    %v343 = vld [vmem:[#allocation8 + $0x160] sm:$0xff]
    %v344 = vld [vmem:[#allocation8 + $0x168] sm:$0xff]
    %v345 = vld [vmem:[#allocation8 + $0x170] sm:$0xff]
    %v346 = vld [vmem:[#allocation8 + $0x178] sm:$0xff]
    %v347 = vld [vmem:[#allocation8 + $0x180] sm:$0xff]
    %v348 = vld [vmem:[#allocation8 + $0x188] sm:$0xff]
    %v349 = vld [vmem:[#allocation8 + $0x190] sm:$0xff]
    %v350 = vld [vmem:[#allocation8 + $0x198] sm:$0xff]
    %v351 = vld [vmem:[#allocation8 + $0x1a0] sm:$0xff]
    %v352 = vld [vmem:[#allocation8 + $0x1a8] sm:$0xff]
    %v353 = vld [vmem:[#allocation8 + $0x1b0] sm:$0xff]
    %v354 = vld [vmem:[#allocation8 + $0x1b8] sm:$0xff]
    %v355 = vld [vmem:[#allocation8 + $0x1c0] sm:$0xff]
    %v356 = vld [vmem:[#allocation8 + $0x1c8] sm:$0xff]
    %v357 = vld [vmem:[#allocation8 + $0x1d0] sm:$0xff]
    %v358 = vld [vmem:[#allocation8 + $0x1d8] sm:$0xff]
    %v359 = vld [vmem:[#allocation8 + $0x1e0] sm:$0xff]
    %v360 = vld [vmem:[#allocation8 + $0x1e8] sm:$0xff]
    %v361 = vld [vmem:[#allocation8 + $0x1f0] sm:$0xff]
    %v362 = vld [vmem:[#allocation8 + $0x1f8] sm:$0xff]
    %363 = vmatprep.subr.mxu0 0.0
    %364 = vmatpush1.msra.mxu0 %v299
    %365 = vmatprep.subr.mxu0 0.0
    %366 = vmatpush1.msra.mxu0 %v300
    %367 = vmatprep.subr.mxu0 0.0
    %368 = vmatpush1.msra.mxu0 %v301
    %369 = vmatprep.subr.mxu0 0.0
    %370 = vmatpush1.msra.mxu0 %v302
    %371 = vmatprep.subr.mxu0 0.0
    %372 = vmatpush1.msra.mxu0 %v303
    %373 = vmatprep.subr.mxu0 0.0
    %374 = vmatpush1.msra.mxu0 %v304
    %375 = vmatprep.subr.mxu0 0.0
    %376 = vmatpush1.msra.mxu0 %v305
    %377 = vmatprep.subr.mxu0 0.0
    %378 = vmatpush1.msra.mxu0 %v306
    %379 = vmatprep.subr.mxu0 0.0
    %380 = vmatpush1.msra.mxu0 %v307
    %381 = vmatprep.subr.mxu0 0.0
    %382 = vmatpush1.msra.mxu0 %v308
    %383 = vmatprep.subr.mxu0 0.0
    %384 = vmatpush1.msra.mxu0 %v309
    %385 = vmatprep.subr.mxu0 0.0
    %386 = vmatpush1.msra.mxu0 %v310
    %387 = vmatprep.subr.mxu0 0.0
    %388 = vmatpush1.msra.mxu0 %v311
    %389 = vmatprep.subr.mxu0 0.0
    %390 = vmatpush1.msra.mxu0 %v312
    %391 = vmatprep.subr.mxu0 0.0
    %392 = vmatpush1.msra.mxu0 %v313
    %393 = vmatprep.subr.mxu0 0.0
    %394 = vmatpush1.msra.mxu0 %v314
    %395 = vmatprep.subr.mxu0 0.0
    %396 = vmatpush1.msra.mxu0 %v315
    %397 = vmatprep.subr.mxu0 0.0
    %398 = vmatpush1.msra.mxu0 %v316
    %399 = vmatprep.subr.mxu0 0.0
    %400 = vmatpush1.msra.mxu0 %v317
    %401 = vmatprep.subr.mxu0 0.0
    %402 = vmatpush1.msra.mxu0 %v318
    %403 = vmatprep.subr.mxu0 0.0
    %404 = vmatpush1.msra.mxu0 %v319
    %405 = vmatprep.subr.mxu0 0.0
    %406 = vmatpush1.msra.mxu0 %v320
    %407 = vmatprep.subr.mxu0 0.0
    %408 = vmatpush1.msra.mxu0 %v321
    %409 = vmatprep.subr.mxu0 0.0
    %410 = vmatpush1.msra.mxu0 %v322
    %411 = vmatprep.subr.mxu0 0.0
    %412 = vmatpush1.msra.mxu0 %v323
    %413 = vmatprep.subr.mxu0 0.0
    %414 = vmatpush1.msra.mxu0 %v324
    %415 = vmatprep.subr.mxu0 0.0
    %416 = vmatpush1.msra.mxu0 %v325
    %417 = vmatprep.subr.mxu0 0.0
    %418 = vmatpush1.msra.mxu0 %v326
    %419 = vmatprep.subr.mxu0 0.0
    %420 = vmatpush1.msra.mxu0 %v327
    %421 = vmatprep.subr.mxu0 0.0
    %422 = vmatpush1.msra.mxu0 %v328
    %423 = vmatprep.subr.mxu0 0.0
    %424 = vmatpush1.msra.mxu0 %v329
    %425 = vmatprep.subr.mxu0 0.0
    %426 = vmatpush1.msra.mxu0 %v330
    %427 = vmatprep.mubr.f32.mxu0 %v212
    %428 = vmatmul.mubr.f32.gmra.mrb[0].mxu0 %v210
    %v429 = vpop.f32.mrb[0].mxu0
    %v430 = vadd.f32 0.0, %v429
    %v431 = vpop.f32.mrb[0].mxu0
    %432 = vmatprep.mubr.f32.mxu0 %v218
    %433 = vmatmul.mubr.f32.gmra.mrb[0].mxu0 %v216
    %v434 = vpop.f32.mrb[0].mxu0
    %v435 = vadd.f32 0.0, %v434
    %v436 = vpop.f32.mrb[0].mxu0
    %437 = vdwg.mxu0
    %438 = vmatprep.subr.mxu0 0.0
    %439 = vmatpush1.msra.mxu0 %v331
    %440 = vmatprep.subr.mxu0 0.0
    %441 = vmatpush1.msra.mxu0 %v332
    %442 = vmatprep.subr.mxu0 0.0
    %443 = vmatpush1.msra.mxu0 %v333
    %444 = vmatprep.subr.mxu0 0.0
    %445 = vmatpush1.msra.mxu0 %v334
    %446 = vmatprep.subr.mxu0 0.0
    %447 = vmatpush1.msra.mxu0 %v335
    %448 = vmatprep.subr.mxu0 0.0
    %449 = vmatpush1.msra.mxu0 %v336
    %450 = vmatprep.subr.mxu0 0.0
    %451 = vmatpush1.msra.mxu0 %v337
    %452 = vmatprep.subr.mxu0 0.0
    %453 = vmatpush1.msra.mxu0 %v338
    %454 = vmatprep.subr.mxu0 0.0
    %455 = vmatpush1.msra.mxu0 %v339
    %456 = vmatprep.subr.mxu0 0.0
    %457 = vmatpush1.msra.mxu0 %v340
    %458 = vmatprep.subr.mxu0 0.0
    %459 = vmatpush1.msra.mxu0 %v341
    %460 = vmatprep.subr.mxu0 0.0
    %461 = vmatpush1.msra.mxu0 %v342
    %462 = vmatprep.subr.mxu0 0.0
    %463 = vmatpush1.msra.mxu0 %v343
    %464 = vmatprep.subr.mxu0 0.0
    %465 = vmatpush1.msra.mxu0 %v344
    %466 = vmatprep.subr.mxu0 0.0
    %467 = vmatpush1.msra.mxu0 %v345
    %468 = vmatprep.subr.mxu0 0.0
    %469 = vmatpush1.msra.mxu0 %v346
    %470 = vmatprep.subr.mxu0 0.0
    %471 = vmatpush1.msra.mxu0 %v347
    %472 = vmatprep.subr.mxu0 0.0
    %473 = vmatpush1.msra.mxu0 %v348
    %474 = vmatprep.subr.mxu0 0.0
    %475 = vmatpush1.msra.mxu0 %v349
    %476 = vmatprep.subr.mxu0 0.0
    %477 = vmatpush1.msra.mxu0 %v350
    %478 = vmatprep.subr.mxu0 0.0
    %479 = vmatpush1.msra.mxu0 %v351
    %480 = vmatprep.subr.mxu0 0.0
    %481 = vmatpush1.msra.mxu0 %v352
    %482 = vmatprep.subr.mxu0 0.0
    %483 = vmatpush1.msra.mxu0 %v353
    %484 = vmatprep.subr.mxu0 0.0
    %485 = vmatpush1.msra.mxu0 %v354
    %486 = vmatprep.subr.mxu0 0.0
    %487 = vmatpush1.msra.mxu0 %v355
    %488 = vmatprep.subr.mxu0 0.0
    %489 = vmatpush1.msra.mxu0 %v356
    %490 = vmatprep.subr.mxu0 0.0
    %491 = vmatpush1.msra.mxu0 %v357
    %492 = vmatprep.subr.mxu0 0.0
    %493 = vmatpush1.msra.mxu0 %v358
    %494 = vmatprep.subr.mxu0 0.0
    %495 = vmatpush1.msra.mxu0 %v359
    %496 = vmatprep.subr.mxu0 0.0
    %497 = vmatpush1.msra.mxu0 %v360
    %498 = vmatprep.subr.mxu0 0.0
    %499 = vmatpush1.msra.mxu0 %v361
    %500 = vmatprep.subr.mxu0 0.0
    %501 = vmatpush1.msra.mxu0 %v362
    %502 = vmatprep.mubr.f32.mxu0 %v289
    %503 = vmatmul.mubr.f32.gmra.mrb[0].mxu0 %v287
    %v504 = vpop.f32.mrb[0].mxu0
    %v505 = vadd.f32 %v430, %v504
    %v506 = vpop.f32.mrb[0].mxu0
    %507 = vmatprep.mubr.f32.mxu0 %v295
    %508 = vmatmul.mubr.f32.gmra.mrb[0].mxu0 %v293
    %v509 = vpop.f32.mrb[0].mxu0
    %v510 = vadd.f32 %v435, %v509
    %v511 = vpop.f32.mrb[0].mxu0
    %512 = vdwg.mxu0
    %v513 = vadd.f32 %v297, %v505
    %v514 = vadd.f32 %v298, %v510
    %515 = vst [vmem:[#allocation2] sm:$0xff] %v513
    %516 = vst [vmem:[#allocation2 + $0x8] sm:$0xff] %v514
    // Predicated region
    $region38: #{tpu_custom_call.1} parent=1 // pred_check
      %p517 = pneg %p71
    $region39: #{tpu_custom_call.1} parent=1 // pred_check_branch
      %519 = sbr.rel (%p517) target = $region41
    $region40: #{tpu_custom_call.1} parent=1 // pred_region
      %v520 = vld [vmem:[#allocation2] sm:$0xff]
      %v521 = vld [vmem:[#allocation2 + $0x8] sm:$0xff]
      %v522 = vld [vmem:[#allocation9] sm:$0x1]
      %v524 = vlaneseq
      %v525 = vshrl.u32 %v524, 7
      %v526 = vsub.s32 0, %v525
      %v527 = vrot.slane %v522, %v526
      %v529 = vadd.f32 %v520, %v527
      %v530 = vadd.f32 %v521, %v527
      %v531 = vmul.f32 %v529, 0.5
      %v532 = vmul.f32 %v530, 0.5
      %v533 = vmul.f32 %v529, 0.70710677
      %v534 = vmul.f32 %v530, 0.70710677
      %v535 = verf.f32.pop %v533
      %v536 = verf.f32.pop %v534
      %v537 = vadd.f32 %v535, 1.0
      %v538 = vadd.f32 %v536, 1.0
      %v539 = vmul.f32 %v531, %v537
      %v540 = vmul.f32 %v532, %v538
      %541 = vst [vmem:[#allocation11] sm:$0xff] %v539
      %542 = vst [vmem:[#allocation11 + $0x8] sm:$0xff] %v540
    $region41: #{tpu_custom_call.1} parent=1 // pred_fallthru
      _
    // Predicated region
    $region42: #{tpu_custom_call.1} parent=1 // pred_check
      _
    $region43: #{tpu_custom_call.1} parent=1 // pred_check_branch
      %544 = sbr.rel (0) target = $region45
    $region44: #{tpu_custom_call.1} parent=1 // pred_region
      %s546 = ssub.s32 256, 256
      %547 = vsyncadd [#allocation5], %s546
      %s548 = sshll.u32 [#allocation11], 4
      %s549 = int_to_ptr.vmem [resolvable:$true] %s548
      %554 = dma.vmem_to_hbm [thread:$0]  %s549, 256, %s4, [#allocation5], 128, 128, 8
    $region45: #{tpu_custom_call.1} parent=1 // pred_fallthru
      _
    // Predicated region
    $region46: #{tpu_custom_call.1} parent=1 // pred_check
      _
    $region47: #{tpu_custom_call.1} parent=1 // pred_check_branch
      %556 = sbr.rel (0) target = $region49
    $region48: #{tpu_custom_call.1} parent=1 // pred_region
      %557 = dma.done [#allocation5], 256
    $region49: #{tpu_custom_call.1} parent=1 // pred_fallthru
      _
    %558 = vsyncpa [#allocation4], 1
    %559 = vsyncpa [#allocation7], 1
    %560 = vsyncpa [#allocation10], 1
    %561 = vsyncpa [#allocation5], 1

</llo_original>
